<compile_context>
chip_gen: v7x
topology: tpu7x:2x2x1
jax: 0.10.0
libtpu: 0.0.40
codegen_flags: <defaults>
</compile_context>

<pallas_src>
import functools

import jax
import jax.numpy as jnp
from jax import lax
from jax.experimental import pallas as pl
from jax.experimental.pallas import tpu as pltpu


def _vmem_config():
    """(tile_budget_bytes, vmem_limit_bytes) derived from the chip's VMEM capacity."""
    try:
        cap = int(pltpu.get_tpu_info().vmem_capacity_bytes)
    except Exception:
        cap = 64 * 1024 * 1024  # conservative (v7x-sized) fallback
    if cap >= 96 * 1024 * 1024:
        # v5e / v6e: 128 MiB physical VMEM -> big tiles, fewer grid steps.
        return 80 * 1024 * 1024, 104 * 1024 * 1024
    # v7x: 64 MiB physical -> keep >= 16 MiB slack under the limit.
    return 32 * 1024 * 1024, 48 * 1024 * 1024


def _pick_tiles(n_rows, vocab, logits_itemsize, tile_budget, v_tile_cap=4096):
    """Choose (row_tile, v_tile, ragged_v) against the VMEM budget."""
    # --- vocab tile ---
    if vocab <= v_tile_cap:
        v_tile = vocab                      # single vocab step; full-dim block is legal
    else:
        v_tile = None
        start = (v_tile_cap // 128) * 128
        # Prefer an exact 128-multiple divisor (no ragged tail / no in-kernel masking),
        # but never drop below 512-wide tiles (tiny vocab steps = per-step overhead).
        for cand in range(start, 511, -128):
            if vocab % cand == 0:
                v_tile = cand
                break
        if v_tile is None:
            v_tile = max(128, start)        # ragged tail handled in-kernel
    ragged_v = (vocab % v_tile) != 0

    # --- row tile ---
    # Streamed logits tile: double-buffered input + ~2x f32 in-kernel temporaries.
    per_row_logits = v_tile * (2 * logits_itemsize + 2 * 4)
    # (row_tile, 1) tensors pad to 128 lanes: labels(x2) + out(x2) + 3 f32 scratch.
    per_row_small = 128 * 4 * 7
    row_tile = tile_budget // (per_row_logits + per_row_small)

    row_align = 16 if logits_itemsize < 4 else 8    # bf16 packs 2 rows / sublane
    # Keep at least 2 row blocks so the "parallel" row axis can feed both v7x cores.
    if n_rows > 2 * row_align:
        half = -(-(n_rows // 2) // row_align) * row_align
        row_tile = min(row_tile, half)
    row_tile = int(max(row_align, min(1024, (row_tile // row_align) * row_align)))
    row_tile = min(row_tile, -(-n_rows // row_align) * row_align)
    return row_tile, v_tile, ragged_v


def _ce_token_loss_kernel(logits_ref, labels_ref, out_ref, m_sc, l_sc, t_sc,
                          *, vocab, v_tile, ragged_v):
    """Online-softmax cross entropy over vocab tiles; emits raw per-token loss.

    logits_ref: (Nt, Vt)  input dtype  -> logits tile (cast to f32 in-kernel)
    labels_ref: (Nt, 1)   int32        -> target class per row
    out_ref:    (Nt, 1)   float32      -> per-token loss (written on last vocab step)
    m_sc/l_sc/t_sc: (Nt,1) f32 scratch -> running max / running sum-exp / target logit
    """
    j = pl.program_id(1)

    @pl.when(j == 0)
    def _():
        m_sc[...] = jnp.full_like(m_sc, -jnp.inf)
        l_sc[...] = jnp.zeros_like(l_sc)
        t_sc[...] = jnp.zeros_like(t_sc)

    # CE math in float32 (matches dtype=torch.float in sharded_cross_entropy).
    x = logits_ref[...].astype(jnp.float32)                  # (Nt, Vt)
    col = lax.broadcasted_iota(jnp.int32, x.shape, 1)        # local column index

    if ragged_v:
        # Last vocab block may extend past V: kill the out-of-bounds tail so it never
        # contributes to max / sum-exp.  (The target compare below can't hit it either
        # since labels < V.)
        x = jnp.where((col + j * v_tile) < vocab, x, -jnp.inf)

    # Target-logit contribution.  Apply the tile offset to the (Nt,1) labels rather than
    # the (Nt,Vt) iota: one narrow VALU op instead of a full-tile add per vreg.
    labels_local = labels_ref[...] - j * v_tile              # (Nt, 1)
    t_sc[...] += jnp.sum(jnp.where(col == labels_local, x, 0.0), axis=-1, keepdims=True)

    # Online logsumexp update.
    m_prev = m_sc[...]
    m_new = jnp.maximum(m_prev, jnp.max(x, axis=-1, keepdims=True))
    l_sc[...] = (l_sc[...] * jnp.exp(m_prev - m_new)
                 + jnp.sum(jnp.exp(x - m_new), axis=-1, keepdims=True))
    m_sc[...] = m_new

    @pl.when(j == pl.num_programs(1) - 1)
    def _():
        # NOTE: rows in the padded tail of a partial row block compute on unspecified
        # VMEM contents; their (per-row isolated) results are dropped by the clamped
        # out-of-bounds writeback.  Do not add any cross-row reduction in-kernel.
        out_ref[...] = (m_sc[...] + jnp.log(l_sc[...])) - t_sc[...]


def loss_forward(sharded_logits, label_ids, label_mask, *, v_tile_cap=4096):
    """Pallas equivalent of Loss.forward.

    sharded_logits: [S, B, V]  (float32 or bf16)
    label_ids:      [B, S]     int
    label_mask:     [B, S]     bool / float
    Returns {'loss': scalar float32}
    """
    S, B, V = sharded_logits.shape
    N = S * B
    itemsize = jnp.dtype(sharded_logits.dtype).itemsize

    # Flatten to [N, V]; transpose labels/mask [B,S] -> [S,B] so row n of the logits
    # matches element n of labels/mask (same pairing as the PyTorch transposes).
    logits2d = sharded_logits.reshape(N, V)
    labels = jnp.transpose(label_ids, (1, 0)).reshape(N, 1).astype(jnp.int32)
    mask_flat = jnp.transpose(label_mask, (1, 0)).reshape(N).astype(jnp.float32)

    tile_budget, vmem_limit = _vmem_config()
    row_tile, v_tile, ragged_v = _pick_tiles(N, V, itemsize, tile_budget,
                                             v_tile_cap=v_tile_cap)
    grid = (pl.cdiv(N, row_tile), pl.cdiv(V, v_tile))

    kernel = functools.partial(_ce_token_loss_kernel,
                               vocab=V, v_tile=v_tile, ragged_v=ragged_v)

    cost = pl.CostEstimate(
        flops=int(5 * N * V),
        transcendentals=int(N * V),
        bytes_accessed=int(N * V * itemsize + N * 8),
    )

    per_token = pl.pallas_call(
        kernel,
        out_shape=jax.ShapeDtypeStruct((N, 1), jnp.float32),
        grid_spec=pltpu.PrefetchScalarGridSpec(
            num_scalar_prefetch=0,
            grid=grid,
            in_specs=[
                pl.BlockSpec((row_tile, v_tile), lambda i, j: (i, j)),  # logits tile
                pl.BlockSpec((row_tile, 1), lambda i, j: (i, 0)),       # labels
            ],
            out_specs=pl.BlockSpec((row_tile, 1), lambda i, j: (i, 0)),  # per-token loss
            scratch_shapes=[
                pltpu.VMEM((row_tile, 1), jnp.float32),   # running max
                pltpu.VMEM((row_tile, 1), jnp.float32),   # running sum-exp
                pltpu.VMEM((row_tile, 1), jnp.float32),   # target logit
            ],
        ),
        compiler_params=pltpu.CompilerParams(
            dimension_semantics=("parallel", "arbitrary"),  # rows shard across TCs
            vmem_limit_bytes=vmem_limit,
        ),
        cost_estimate=cost,
    )(logits2d, labels)

    # Masked mean in the wrapper (tiny reduction; keeps the grid fully parallel over
    # rows).  Multiply semantics match the PyTorch reference; like the reference, an
    # all-zero mask yields NaN.
    loss = jnp.vdot(per_token[:, 0], mask_flat) / jnp.sum(mask_flat)
    return {"loss": loss}


def _reference_loss(sharded_logits, label_ids, label_mask):
    """Pure-JAX reference for validation."""
    x = sharded_logits.astype(jnp.float32)                       # [S, B, V]
    lse = jax.scipy.special.logsumexp(x, axis=-1)                # [S, B]
    labels_sb = jnp.transpose(label_ids, (1, 0)).astype(jnp.int32)
    tgt = jnp.take_along_axis(x, labels_sb[..., None], axis=-1)[..., 0]
    loss_tok = (lse - tgt).T                                     # [B, S]
    m = label_mask.astype(jnp.float32)
    return (loss_tok * m).sum() / m.sum()


def _make_inputs(key, S, B, V, dtype):
    k1, k2, k3 = jax.random.split(key, 3)
    logits = jax.random.normal(k1, (S, B, V), dtype=dtype)
    labels = jax.random.randint(k2, (B, S), 0, V, dtype=jnp.int32)
    mask = (jax.random.uniform(k3, (B, S)) > 0.25).astype(jnp.float32)
    mask = mask.at[0, 0].set(1.0)   # ensure nonzero denominator
    return logits, labels, mask


if __name__ == "__main__":
    key = jax.random.PRNGKey(0)

    # Case 1: float32 logits, single vocab tile.
    logits, labels, mask = _make_inputs(jax.random.fold_in(key, 1), 8, 2, 256, jnp.float32)
    out = jax.block_until_ready(loss_forward(logits, labels, mask)["loss"])
    ref = jax.block_until_ready(_reference_loss(logits, labels, mask))
    assert jnp.allclose(out, ref, rtol=1e-5, atol=1e-5), (out, ref)

    # Case 2: bf16 logits, multiple vocab tiles (exercises the online-softmax path).
    logits, labels, mask = _make_inputs(jax.random.fold_in(key, 2), 8, 4, 512, jnp.bfloat16)
    out = jax.block_until_ready(loss_forward(logits, labels, mask, v_tile_cap=128)["loss"])
    ref = jax.block_until_ready(_reference_loss(logits, labels, mask))
    assert jnp.allclose(out, ref, rtol=1e-4, atol=1e-4), (out, ref)

    # Case 3: row count not a multiple of the row tile + vocab not a multiple of 128
    # but small enough for a single full-dim vocab block.
    logits, labels, mask = _make_inputs(jax.random.fold_in(key, 3), 5, 3, 130, jnp.float32)
    out = jax.block_until_ready(loss_forward(logits, labels, mask)["loss"])
    ref = jax.block_until_ready(_reference_loss(logits, labels, mask))
    assert jnp.allclose(out, ref, rtol=1e-5, atol=1e-5), (out, ref)

    # Case 4: ragged vocab tiling (V has no 128-multiple divisor <= cap): the last
    # vocab block is partial and masked in-kernel.
    logits, labels, mask = _make_inputs(jax.random.fold_in(key, 4), 8, 2, 300, jnp.float32)
    out = jax.block_until_ready(loss_forward(logits, labels, mask, v_tile_cap=128)["loss"])
    ref = jax.block_until_ready(_reference_loss(logits, labels, mask))
    assert jnp.allclose(out, ref, rtol=1e-5, atol=1e-5), (out, ref)

    print("KERNEL_OK")
</pallas_src>

<mosaic_0001>
module attributes {stable_mosaic.version = 11 : i64} {
  func.func @_ce_token_loss_kernel(%arg0: i32, %arg1: i32, %arg2: memref<16x256xf32, #tpu.memory_space<vmem>>, %arg3: memref<16x1xi32, #tpu.memory_space<vmem>>, %arg4: memref<16x1xf32, #tpu.memory_space<vmem>>, %arg5: memref<16x1xf32, #tpu.memory_space<vmem>>, %arg6: memref<16x1xf32, #tpu.memory_space<vmem>>, %arg7: memref<16x1xf32, #tpu.memory_space<vmem>>) attributes {dimension_semantics = [#tpu.dimension_semantics<parallel>, #tpu.dimension_semantics<arbitrary>], iteration_bounds = array<i64: 1, 1>, scalar_prefetch = 0 : i64, scratch_operands = 3 : i64, tpu.core_type = #tpu.core_type<tc>, window_params = [{transform_indices = @transform_0, window_bounds = array<i64: 16, 256>}, {transform_indices = @transform_1, window_bounds = array<i64: 16, 1>}, {transform_indices = @transform_2, window_bounds = array<i64: 16, 1>}]} {
    %c0_i32 = arith.constant 0 : i32
    %0 = arith.cmpi eq, %arg1, %c0_i32 : i32
    %1 = arith.extui %0 : i1 to i32
    %c0_i32_0 = arith.constant 0 : i32
    %2 = arith.cmpi ne, %1, %c0_i32_0 : i32
    scf.if %2 {
      %cst_21 = arith.constant 0xFF800000 : f32
      %37 = vector.broadcast %cst_21 : f32 to vector<16x1xf32>
      %c0_22 = arith.constant 0 : index
      %c0_23 = arith.constant 0 : index
      %38 = vector.load %arg5[%c0_22, %c0_23] : memref<16x1xf32, #tpu.memory_space<vmem>>, vector<16x1xf32>
      tpu.vector_store %arg5[%c0_22, %c0_23], %37 {strides = array<i32>} : memref<16x1xf32, #tpu.memory_space<vmem>>, vector<16x1xf32>,
      %cst_24 = arith.constant 0.000000e+00 : f32
      %39 = vector.broadcast %cst_24 : f32 to vector<16x1xf32>
      %c0_25 = arith.constant 0 : index
      %c0_26 = arith.constant 0 : index
      %40 = vector.load %arg6[%c0_25, %c0_26] : memref<16x1xf32, #tpu.memory_space<vmem>>, vector<16x1xf32>
      tpu.vector_store %arg6[%c0_25, %c0_26], %39 {strides = array<i32>} : memref<16x1xf32, #tpu.memory_space<vmem>>, vector<16x1xf32>,
      %cst_27 = arith.constant 0.000000e+00 : f32
      %41 = vector.broadcast %cst_27 : f32 to vector<16x1xf32>
      %c0_28 = arith.constant 0 : index
      %c0_29 = arith.constant 0 : index
      %42 = vector.load %arg7[%c0_28, %c0_29] : memref<16x1xf32, #tpu.memory_space<vmem>>, vector<16x1xf32>
      tpu.vector_store %arg7[%c0_28, %c0_29], %41 {strides = array<i32>} : memref<16x1xf32, #tpu.memory_space<vmem>>, vector<16x1xf32>,
    } else {
    }
    %c0 = arith.constant 0 : index
    %c0_1 = arith.constant 0 : index
    %3 = vector.load %arg2[%c0, %c0_1] : memref<16x256xf32, #tpu.memory_space<vmem>>, vector<16x256xf32>
    %4 = tpu.iota {dimensions = array<i32: 1>} : vector<16x256xi32>
    %c0_2 = arith.constant 0 : index
    %c0_3 = arith.constant 0 : index
    %5 = vector.load %arg3[%c0_2, %c0_3] : memref<16x1xi32, #tpu.memory_space<vmem>>, vector<16x1xi32>
    %c256_i32 = arith.constant 256 : i32
    %6 = arith.muli %arg1, %c256_i32 : i32
    %7 = vector.broadcast %6 : i32 to vector<16x1xi32>
    %8 = arith.subi %5, %7 : vector<16x1xi32>
    %c0_4 = arith.constant 0 : index
    %c0_5 = arith.constant 0 : index
    %9 = vector.load %arg7[%c0_4, %c0_5] : memref<16x1xf32, #tpu.memory_space<vmem>>, vector<16x1xf32>
    %10 = vector.broadcast %8 : vector<16x1xi32> to vector<16x256xi32>
    %11 = arith.cmpi eq, %4, %10 : vector<16x256xi32>
    %cst = arith.constant 0.000000e+00 : f32
    %12 = vector.broadcast %cst : f32 to vector<16x256xf32>
    %13 = arith.select %11, %3, %12 : vector<16x256xi1>, vector<16x256xf32>
    %cst_6 = arith.constant dense<0.000000e+00> : vector<16xf32>
    %14 = vector.multi_reduction <add>, %13, %cst_6 [1] : vector<16x256xf32> to vector<16xf32>
    %15 = vector.shape_cast %14 : vector<16xf32> to vector<16x1xf32>
    %16 = arith.addf %9, %15 : vector<16x1xf32>
    %c0_7 = arith.constant 0 : index
    %c0_8 = arith.constant 0 : index
    %17 = vector.load %arg7[%c0_7, %c0_8] : memref<16x1xf32, #tpu.memory_space<vmem>>, vector<16x1xf32>
    tpu.vector_store %arg7[%c0_7, %c0_8], %16 {strides = array<i32>} : memref<16x1xf32, #tpu.memory_space<vmem>>, vector<16x1xf32>,
    %c0_9 = arith.constant 0 : index
    %c0_10 = arith.constant 0 : index
    %18 = vector.load %arg5[%c0_9, %c0_10] : memref<16x1xf32, #tpu.memory_space<vmem>>, vector<16x1xf32>
    %cst_11 = arith.constant dense<0xFF800000> : vector<16xf32>
    %19 = vector.multi_reduction <maximumf>, %3, %cst_11 [1] : vector<16x256xf32> to vector<16xf32>
    %20 = vector.shape_cast %19 : vector<16xf32> to vector<16x1xf32>
    %21 = arith.maximumf %18, %20 : vector<16x1xf32>
    %c0_12 = arith.constant 0 : index
    %c0_13 = arith.constant 0 : index
    %22 = vector.load %arg6[%c0_12, %c0_13] : memref<16x1xf32, #tpu.memory_space<vmem>>, vector<16x1xf32>
    %23 = arith.subf %18, %21 : vector<16x1xf32>
    %24 = math.exp %23 : vector<16x1xf32>
    %25 = arith.mulf %22, %24 : vector<16x1xf32>
    %26 = vector.broadcast %21 : vector<16x1xf32> to vector<16x256xf32>
    %27 = arith.subf %3, %26 : vector<16x256xf32>
    %28 = math.exp %27 : vector<16x256xf32>
    %cst_14 = arith.constant dense<0.000000e+00> : vector<16xf32>
    %29 = vector.multi_reduction <add>, %28, %cst_14 [1] : vector<16x256xf32> to vector<16xf32>
    %30 = vector.shape_cast %29 : vector<16xf32> to vector<16x1xf32>
    %31 = arith.addf %25, %30 : vector<16x1xf32>
    %c0_15 = arith.constant 0 : index
    %c0_16 = arith.constant 0 : index
    %32 = vector.load %arg6[%c0_15, %c0_16] : memref<16x1xf32, #tpu.memory_space<vmem>>, vector<16x1xf32>
    tpu.vector_store %arg6[%c0_15, %c0_16], %31 {strides = array<i32>} : memref<16x1xf32, #tpu.memory_space<vmem>>, vector<16x1xf32>,
    %c0_17 = arith.constant 0 : index
    %c0_18 = arith.constant 0 : index
    %33 = vector.load %arg5[%c0_17, %c0_18] : memref<16x1xf32, #tpu.memory_space<vmem>>, vector<16x1xf32>
    tpu.vector_store %arg5[%c0_17, %c0_18], %21 {strides = array<i32>} : memref<16x1xf32, #tpu.memory_space<vmem>>, vector<16x1xf32>,
    %c0_i32_19 = arith.constant 0 : i32
    %34 = arith.cmpi eq, %arg1, %c0_i32_19 : i32
    %35 = arith.extui %34 : i1 to i32
    %c0_i32_20 = arith.constant 0 : i32
    %36 = arith.cmpi ne, %35, %c0_i32_20 : i32
    scf.if %36 {
      %c0_21 = arith.constant 0 : index
      %c0_22 = arith.constant 0 : index
      %37 = vector.load %arg5[%c0_21, %c0_22] : memref<16x1xf32, #tpu.memory_space<vmem>>, vector<16x1xf32>
      %c0_23 = arith.constant 0 : index
      %c0_24 = arith.constant 0 : index
      %38 = vector.load %arg6[%c0_23, %c0_24] : memref<16x1xf32, #tpu.memory_space<vmem>>, vector<16x1xf32>
      %39 = math.log %38 : vector<16x1xf32>
      %40 = arith.addf %37, %39 : vector<16x1xf32>
      %c0_25 = arith.constant 0 : index
      %c0_26 = arith.constant 0 : index
      %41 = vector.load %arg7[%c0_25, %c0_26] : memref<16x1xf32, #tpu.memory_space<vmem>>, vector<16x1xf32>
      %42 = arith.subf %40, %41 : vector<16x1xf32>
      %c0_27 = arith.constant 0 : index
      %c0_28 = arith.constant 0 : index
      %43 = vector.load %arg4[%c0_27, %c0_28] : memref<16x1xf32, #tpu.memory_space<vmem>>, vector<16x1xf32>
      tpu.vector_store %arg4[%c0_27, %c0_28], %42 {strides = array<i32>} : memref<16x1xf32, #tpu.memory_space<vmem>>, vector<16x1xf32>,
    } else {
    }
    return
  }
  func.func @transform_0(%arg0: i32, %arg1: i32) -> (i32, i32) {
    %c0_i32 = arith.constant 0 : i32
    return %arg0, %arg1 : i32, i32
  }
  func.func @transform_1(%arg0: i32, %arg1: i32) -> (i32, i32) {
    %c0_i32 = arith.constant 0 : i32
    %c0_i32_0 = arith.constant 0 : i32
    return %arg0, %c0_i32 : i32, i32
  }
  func.func @transform_2(%arg0: i32, %arg1: i32) -> (i32, i32) {
    %c0_i32 = arith.constant 0 : i32
    %c0_i32_0 = arith.constant 0 : i32
    return %arg0, %c0_i32 : i32, i32
  }
}

</mosaic_0001>

<llo_original>
// kernel: tpu_custom_call.1
$region0: #{tpu_custom_call.1}
  #allocation0 [shape = 'u32[]', space=smem, size = 0x4, offset = 0x4, fixed_abs, tag = 'smem constant byte address 0x4 - core index']
  #allocation1 [shape = 'u32[144,128]{1,0:T(1,128)}', space=vmem, size = 0x12000, scoped, tag = 'internal scratch']
  #allocation2 [shape = 'f32[16,1]{1,0:T(8,128)}', space=vmem, size = 0x2000, scoped, tag = 'scratch operand']
  #allocation3 [shape = 'f32[16,1]{1,0:T(8,128)}', space=vmem, size = 0x2000, scoped, tag = 'scratch operand']
  #allocation4 [shape = 'f32[16,1]{1,0:T(8,128)}', space=vmem, size = 0x2000, scoped, tag = 'scratch operand']
  %s0 = inlined_call_operand.hbm [shape: f32[16,256], index: 0, kind: input, shape index: {}]
  %s1 = inlined_call_operand.vmem [shape: s32[16,1], index: 1, kind: input, shape index: {}]
  %s2 = inlined_call_operand.vmem [shape: f32[16,1], index: 2, kind: output, shape index: {}]
  %s3 = sld [smem:[#allocation0]]
  $region30: #{tpu_custom_call.1} parent=0
    _
  %s5 = ssub.s32 1, %s3
  %s6 = scalar_select 0, %s5, %s3
  $region1: #{tpu_custom_call.1} parent=0
    #allocation5 [shape = 'u8[16384]{0}', space=vmem, size = 0x4000, scoped, tag = 'input window, operand 0, single buffered']
    #allocation6 [shape = 's32[1]{0}', space=sflag, size = 0x4, scoped, tag = 'scoped memory for tpu_custom_call.1']
    %7 = vsyncpa [#allocation6], 0
    // Predicated region
    $region2: #{tpu_custom_call.1} parent=1 // pred_check
      _
    $region3: #{tpu_custom_call.1} parent=1 // pred_check_branch
      %9 = sbr.rel (0) target = $region5
    $region4: #{tpu_custom_call.1} parent=1 // pred_region
      %s11 = ssub.s32 512, 512
      %12 = vsyncadd [#allocation6], %s11
      %s13 = sshll.u32 [#allocation5], 4
      %s14 = int_to_ptr.vmem [resolvable:$true] %s13
      %19 = dma.hbm_to_vmem [thread:$0]  %s0, 512, %s14, [#allocation6], 256, 256, 16
    $region5: #{tpu_custom_call.1} parent=1 // pred_fallthru
      _
    // Predicated region
    $region6: #{tpu_custom_call.1} parent=1 // pred_check
      _
    $region7: #{tpu_custom_call.1} parent=1 // pred_check_branch
      %21 = sbr.rel (0) target = $region9
    $region8: #{tpu_custom_call.1} parent=1 // pred_region
      _
    $region9: #{tpu_custom_call.1} parent=1 // pred_fallthru
      _
    // Predicated region
    $region10: #{tpu_custom_call.1} parent=1 // pred_check
      _
    $region11: #{tpu_custom_call.1} parent=1 // pred_check_branch
      %23 = sbr.rel (0) target = $region13
    $region12: #{tpu_custom_call.1} parent=1 // pred_region
      %24 = dma.done [#allocation6], 512
    $region13: #{tpu_custom_call.1} parent=1 // pred_fallthru
      _
    %p25 = scmp.eq.s32.totalorder 0, 0
    // Predicated region
    $region14: #{tpu_custom_call.1} parent=1 // pred_check
      %p26 = pneg %p25
    $region15: #{tpu_custom_call.1} parent=1 // pred_check_branch
      %28 = sbr.rel (%p26) target = $region17
    $region16: #{tpu_custom_call.1} parent=1 // pred_region
      %vm29 = vcmask 7168
      %30 = vst.msk [vmem:[#allocation2] sm:$0xff] %vm29, -inf
      %31 = vst.msk [vmem:[#allocation2 + $0x8] sm:$0xff] %vm29, -inf
      %32 = vst.msk [vmem:[#allocation3] sm:$0xff] %vm29, 0.0
      %33 = vst.msk [vmem:[#allocation3 + $0x8] sm:$0xff] %vm29, 0.0
      %34 = vst.msk [vmem:[#allocation4] sm:$0xff] %vm29, 0.0
      %35 = vst.msk [vmem:[#allocation4 + $0x8] sm:$0xff] %vm29, 0.0
    $region17: #{tpu_custom_call.1} parent=1 // pred_fallthru
      _
    %v36 = vld [vmem:[#allocation5] sm:$0xff]
    %v37 = vld [vmem:[#allocation5 + $0x8] sm:$0xff]
    %v38 = vld [vmem:[#allocation5 + $0x10] sm:$0xff]
    %v39 = vld [vmem:[#allocation5 + $0x18] sm:$0xff]
    %v40 = vlaneseq
    %v41 = vand.u32 %v40, 127
    %v42 = vadd.s32 %v41, 128
    %v43 = vld [vmem:[%s1] sm:$0xff]
    %v44 = vld [vmem:[%s1 + $0x8] sm:$0xff]
    %s45 = smul.u32 0, 256
    %v46 = vstv %s45
    %v47 = vsub.s32 %v43, %v46
    %v48 = vsub.s32 %v44, %v46
    %v49 = vld [vmem:[#allocation4] sm:$0xff]
    %v50 = vld [vmem:[#allocation4 + $0x8] sm:$0xff]
    %51 = vset.pattern.permute.xlu0 0
    %52 = vperm.xlu0 %51, %v47
    %v53 = vpop.permute.xlu0 %52
    %54 = vset.pattern.permute.xlu0 0
    %55 = vperm.xlu0 %54, %v48
    %v56 = vpop.permute.xlu0 %55
    %vm57 = vcmp.eq.s32.totalorder %v41, %v53
    %vm58 = vcmp.eq.s32.totalorder %v42, %v53
    %vm59 = vcmp.eq.s32.totalorder %v41, %v56
    %vm60 = vcmp.eq.s32.totalorder %v42, %v56
    %v61 = vsel %vm57, %v36, 0.0
    %v62 = vsel %vm58, %v37, 0.0
    %v63 = vsel %vm59, %v38, 0.0
    %v64 = vsel %vm60, %v39, 0.0
    %v65 = vadd.f32 %v61, %v62
    %66 = vadd.xlane.f32.xlu0 %v65
    %v67 = vpop.xlane.xlu0 %66
    %v68 = vadd.f32 %v63, %v64
    %69 = vadd.xlane.f32.xlu0 %v68
    %v70 = vpop.xlane.xlu0 %69
    %v71 = vadd.f32 %v49, %v67
    %v72 = vadd.f32 %v50, %v70
    %vm73 = vcmask 7168
    %74 = vst.msk [vmem:[#allocation4] sm:$0xff] %vm73, %v71
    %75 = vst.msk [vmem:[#allocation4 + $0x8] sm:$0xff] %vm73, %v72
    %v76 = vld [vmem:[#allocation2] sm:$0xff]
    %v77 = vld [vmem:[#allocation2 + $0x8] sm:$0xff]
    %v78 = vmax.f32 %v36, %v37
    %79 = vmax.xlane.f32.xlu0 %v78
    %v80 = vpop.xlane.xlu0 %79
    %v81 = vmax.f32 %v38, %v39
    %82 = vmax.xlane.f32.xlu0 %v81
    %v83 = vpop.xlane.xlu0 %82
    %v84 = vmax.f32 %v76, %v80
    %v85 = vmax.f32 %v77, %v83
    %v86 = vld [vmem:[#allocation3] sm:$0xff]
    %v87 = vld [vmem:[#allocation3 + $0x8] sm:$0xff]
    %v88 = vsub.f32 %v76, %v84
    %v89 = vsub.f32 %v77, %v85
    %v90 = vmul.f32 %v88, 1.442695
    %v91 = vpow.pop %v90
    %v92 = vmul.f32 %v89, 1.442695
    %v93 = vpow.pop %v92
    %v94 = vmul.f32 %v86, %v91
    %v95 = vmul.f32 %v87, %v93
    %97 = vset.pattern.permute.xlu0 0
    %98 = vperm.xlu0 %97, %v84
    %v99 = vpop.permute.xlu0 %98
    %102 = vset.pattern.permute.xlu0 0
    %103 = vperm.xlu0 %102, %v85
    %v104 = vpop.permute.xlu0 %103
    %v106 = vsub.f32 %v36, %v99
    %v107 = vsub.f32 %v37, %v99
    %v108 = vsub.f32 %v38, %v104
    %v109 = vsub.f32 %v39, %v104
    %v110 = vmul.f32 %v106, 1.442695
    %v111 = vpow.pop %v110
    %v112 = vmul.f32 %v107, 1.442695
    %v113 = vpow.pop %v112
    %v114 = vmul.f32 %v108, 1.442695
    %v115 = vpow.pop %v114
    %v116 = vmul.f32 %v109, 1.442695
    %v117 = vpow.pop %v116
    %v118 = vadd.f32 %v111, %v113
    %119 = vadd.xlane.f32.xlu0 %v118
    %v120 = vpop.xlane.xlu0 %119
    %v121 = vadd.f32 %v115, %v117
    %122 = vadd.xlane.f32.xlu0 %v121
    %v123 = vpop.xlane.xlu0 %122
    %v124 = vadd.f32 %v94, %v120
    %v125 = vadd.f32 %v95, %v123
    %126 = vst.msk [vmem:[#allocation3] sm:$0xff] %vm73, %v124
    %127 = vst.msk [vmem:[#allocation3 + $0x8] sm:$0xff] %vm73, %v125
    %128 = vst.msk [vmem:[#allocation2] sm:$0xff] %vm73, %v84
    %129 = vst.msk [vmem:[#allocation2 + $0x8] sm:$0xff] %vm73, %v85
    // Predicated region
    $region18: #{tpu_custom_call.1} parent=1 // pred_check
      %p130 = pneg %p25
    $region19: #{tpu_custom_call.1} parent=1 // pred_check_branch
      %132 = sbr.rel (%p130) target = $region21
    $region20: #{tpu_custom_call.1} parent=1 // pred_region
      %v133 = vld [vmem:[#allocation2] sm:$0xff]
      %v134 = vld [vmem:[#allocation2 + $0x8] sm:$0xff]
      %v135 = vld [vmem:[#allocation3] sm:$0xff]
      %v136 = vld [vmem:[#allocation3 + $0x8] sm:$0xff]
      %v137 = vlog2.pop %v135
      %v138 = vmul.f32 %v137, 0.6931472
      %v139 = vlog2.pop %v136
      %v140 = vmul.f32 %v139, 0.6931472
      %v141 = vadd.f32 %v133, %v138
      %v142 = vadd.f32 %v134, %v140
      %v143 = vld [vmem:[#allocation4] sm:$0xff]
      %v144 = vld [vmem:[#allocation4 + $0x8] sm:$0xff]
      %v145 = vsub.f32 %v141, %v143
      %v146 = vsub.f32 %v142, %v144
      %147 = vst.msk [vmem:[%s2] sm:$0xff] %vm73, %v145
      %148 = vst.msk [vmem:[%s2 + $0x8] sm:$0xff] %vm73, %v146
    $region21: #{tpu_custom_call.1} parent=1 // pred_fallthru
      _
    // Predicated region
    $region22: #{tpu_custom_call.1} parent=1 // pred_check
      _
    $region23: #{tpu_custom_call.1} parent=1 // pred_check_branch
      %150 = sbr.rel (0) target = $region25
    $region24: #{tpu_custom_call.1} parent=1 // pred_region
      _
    $region25: #{tpu_custom_call.1} parent=1 // pred_fallthru
      _
    // Predicated region
    $region26: #{tpu_custom_call.1} parent=1 // pred_check
      _
    $region27: #{tpu_custom_call.1} parent=1 // pred_check_branch
      %152 = sbr.rel (0) target = $region29
    $region28: #{tpu_custom_call.1} parent=1 // pred_region
      _
    $region29: #{tpu_custom_call.1} parent=1 // pred_fallthru
      _
    %153 = vsyncpa [#allocation6], 1

</llo_original>
